<compile_context>
chip_gen: v5e
topology: v5e:2x2
jax: 0.10.0
libtpu: 0.0.40
codegen_flags: <defaults>
</compile_context>

<pallas_src>
import jax
import jax.numpy as jnp
import numpy as np
from jax import lax
from jax.experimental import pallas as pl
from jax.experimental.pallas import tpu as pltpu

H = 16
W = 16
H4, W4 = H // 4, W // 4          # pooled grid: 4 x 4
C1 = 32                          # hidden channels of conv1
KH = 3                           # 3x3 kernels
K_IM2COL = KH * W + 1            # 48 rows-only taps + 1 bias column
K_PAD = 56                       # K padded to a sublane multiple


# --------------------------------------------------------------------------
# One-time (per weight set) host-side weight re-layout -- pure numpy.
# --------------------------------------------------------------------------
def _conv1_weight_np(w1, b1):
    """(C1,1,3,3) OIHW + (C1,) -> (K_PAD, 512) fused Toeplitz + bias matrix.

    Row  r = dy*16 + j      (rows-only im2col column layout, j = raw image col)
    Row  48                 multiplies the ones column -> conv1 bias
    Col  n = wi*128 + w4*32 + c   with output width w = 4*w4 + wi
    Value = w1[c, 0, dy, j - w + 1] when the tap is inside the 3-wide window,
            else 0 (zero width-padding baked in).
    """
    w1 = np.asarray(w1, np.float32)
    b1 = np.asarray(b1, np.float32)
    j = np.arange(W).reshape(1, W, 1, 1, 1)
    wi = np.arange(4).reshape(1, 1, 4, 1, 1)
    w4 = np.arange(W4).reshape(1, 1, 1, W4, 1)
    c = np.arange(C1).reshape(1, 1, 1, 1, C1)
    dy = np.arange(KH).reshape(KH, 1, 1, 1, 1)
    dx = j - (4 * w4 + wi) + 1
    valid = (dx >= 0) & (dx < KH)
    vals = w1[c, 0, dy, np.clip(dx, 0, KH - 1)]              # (3,16,4,4,32)
    mat = np.where(valid, vals, 0.0).reshape(KH * W, W * C1)  # (48, 512)
    bias = np.tile(b1, 4 * W4)[None, :]                       # (1, 512)
    pad = np.zeros((K_PAD - KH * W - 1, W * C1), np.float32)
    return np.concatenate([mat, bias, pad], axis=0)           # (56, 512)


def _conv2_weight_np(w2):
    """(cout,C1,3,3) -> (512, 16*cout) Toeplitz (taps + zero padding baked in).

    Row  m = h4i*128 + w4i*32 + ci   (layout of the pooled activations)
    Col  n = (h4o*4 + w4o)*cout + co (layout of the lane-dense output row)
    """
    w2 = np.asarray(w2, np.float32)
    c_out = w2.shape[0]
    h4i = np.arange(H4).reshape(H4, 1, 1, 1, 1, 1)
    w4i = np.arange(W4).reshape(1, W4, 1, 1, 1, 1)
    ci = np.arange(C1).reshape(1, 1, C1, 1, 1, 1)
    h4o = np.arange(H4).reshape(1, 1, 1, H4, 1, 1)
    w4o = np.arange(W4).reshape(1, 1, 1, 1, W4, 1)
    co = np.arange(c_out).reshape(1, 1, 1, 1, 1, c_out)
    dy = h4i - h4o + 1
    dx = w4i - w4o + 1
    valid = (dy >= 0) & (dy < KH) & (dx >= 0) & (dx < KH)
    vals = w2[co, ci, np.clip(dy, 0, KH - 1), np.clip(dx, 0, KH - 1)]
    return np.where(valid, vals, 0.0).reshape(H4 * W4 * C1, H4 * W4 * c_out)


def prepare_edge_encoder_params(w1, b1, w2, b2):
    """Run ONCE per weight set; reuse the returned arrays every forward call."""
    c_out = np.asarray(w2).shape[0]
    w1t = jnp.asarray(_conv1_weight_np(w1, b1), jnp.bfloat16)     # (56, 512)
    w2t = jnp.asarray(_conv2_weight_np(w2), jnp.bfloat16)         # (512, 16*cout)
    b2r = jnp.asarray(np.tile(np.asarray(b2, np.float32), H4 * W4)
                      .reshape(1, H4 * W4 * c_out))               # (1, 16*cout) f32
    return w1t, w2t, b2r


# --------------------------------------------------------------------------
# Kernel
# --------------------------------------------------------------------------
def edge_encoder_kernel(lhs_ref, w1t_ref, w2t_ref, b2_ref, o_ref):
    # lhs_ref: (1, BB, 16, K_PAD) bf16  rows-only im2col (+ ones/zero columns)
    # w1t_ref: (K_PAD, 512)       bf16  conv1 Toeplitz, width-pad + bias baked in
    # w2t_ref: (512, 16*cout)     bf16  conv2 Toeplitz, taps + zero-pad baked in
    # b2_ref : (1, 16*cout)       f32   conv2 bias tiled over the 4x4 grid
    # o_ref  : (1, BB, 16*cout)   f32   lane-dense per-image output rows
    bb = lhs_ref.shape[1]
    lanes = 4 * C1                                                # 128

    # ---- Conv2d(1,32,3,p=1) + bias: ONE bf16 MXU matmul, f32 accumulation ----
    # rows = (b, h), lanes of the result = (wi, w4, c) with col = wi*128+w4*32+c
    lhs = lhs_ref[0].reshape(bb * H, K_PAD)
    y = jnp.dot(lhs, w1t_ref[...], preferred_element_type=jnp.float32)

    # ---- SiLU: exp + approximate reciprocal ride the EUP slot, not the VALU ----
    y = y * pl.reciprocal(1.0 + jnp.exp(-y), approx=True)

    # ---- MaxPool2d(2) twice == single 4x4 max pool ----
    # width: max of four aligned 128-lane slabs (wi) -> lanes become (w4, c)
    yw = jnp.maximum(
        jnp.maximum(y[:, 0 * lanes:1 * lanes], y[:, 1 * lanes:2 * lanes]),
        jnp.maximum(y[:, 2 * lanes:3 * lanes], y[:, 3 * lanes:4 * lanes]))
    # height: rows are (b, h4, hi) -> one grouped sublane reduction over hi
    p = jnp.max(yw.reshape(bb * H4, 4, lanes), axis=1)            # (BB*4, 128)
    p = p.reshape(bb, H4 * lanes)                                 # (BB, 512), lanes (h4,w4,c)

    # ---- Conv2d(32,cout,3,p=1) on the 4x4 grid: one bf16 matmul ----
    out = jnp.dot(p.astype(jnp.bfloat16), w2t_ref[...],
                  preferred_element_type=jnp.float32)
    o_ref[0] = out + b2_ref[...]                                  # (BB, 16*cout)


# --------------------------------------------------------------------------
# Wrapper
# --------------------------------------------------------------------------
def _pick_grid(batch, block_b):
    """Blocks are multiples of 8 (unmasked output stores); one step for small
    batches (no megacore benefit), even step count for large batches (v7x)."""
    if block_b is None:
        if batch <= 128:
            block_b = ((batch + 7) // 8) * 8
        else:
            g = 2 * pl.cdiv(batch, 256)                # even number of steps
            block_b = ((pl.cdiv(batch, g) + 7) // 8) * 8
    block_b = max(8, ((block_b + 7) // 8) * 8)
    return pl.cdiv(batch, block_b), block_b


def _im2col_rows(x):
    """(B,16,16) -> (B,16,K_PAD) bf16 rows-only im2col with bias/pad columns.

    lhs[b, h, dy*16 + j] = x[b, h+dy-1, j]  (zero when the row is out of range),
    lhs[b, h, 48] = 1 (folds conv1 bias into the matmul), lhs[b, h, 49:] = 0.
    """
    bsz = x.shape[0]
    z = jnp.zeros((bsz, 1, W), x.dtype)
    up = jnp.concatenate([z, x[:, :H - 1]], axis=1)               # row h-1
    down = jnp.concatenate([x[:, 1:], z], axis=1)                 # row h+1
    ones = jnp.ones((bsz, H, 1), x.dtype)
    pad = jnp.zeros((bsz, H, K_PAD - KH * W - 1), x.dtype)
    return jnp.concatenate([up, x, down, ones, pad], axis=2).astype(jnp.bfloat16)


def edge_encoder(edge_map, w1t, w2t, b2r, *, block_b=None):
    """edge_map: (B, 1, 16, 16) NCHW -> (B, cout, 4, 4) NCHW."""
    B = edge_map.shape[0]
    assert edge_map.shape[1:] == (1, H, W)
    n_out = b2r.shape[1]
    c_out = n_out // (H4 * W4)

    g, blk = _pick_grid(B, block_b)
    b_pad = g * blk

    # Data-path prep only (no jnp.pad of the image, no weight work).
    lhs = _im2col_rows(edge_map[:, 0].astype(jnp.float32))        # (B, 16, 56) bf16
    if b_pad != B:
        # Padded batch rows produce garbage that is sliced off below (cheaper
        # than masking them inside the kernel).
        lhs = jnp.pad(lhs, ((0, b_pad - B), (0, 0), (0, 0)))
    lhs = lhs.reshape(g, blk, H, K_PAD)

    out = pl.pallas_call(
        edge_encoder_kernel,
        out_shape=jax.ShapeDtypeStruct((g, blk, n_out), jnp.float32),
        grid=(g,),
        in_specs=[
            pl.BlockSpec((1, blk, H, K_PAD), lambda i: (i, 0, 0, 0)),
            pl.BlockSpec((K_PAD, W * C1), lambda i: (0, 0)),
            pl.BlockSpec((H4 * W4 * C1, n_out), lambda i: (0, 0)),
            pl.BlockSpec((1, n_out), lambda i: (0, 0)),
        ],
        out_specs=pl.BlockSpec((1, blk, n_out), lambda i: (i, 0, 0)),
        compiler_params=pltpu.CompilerParams(
            dimension_semantics=("parallel",)),
    )(lhs, w1t, w2t, b2r)

    out = out.reshape(b_pad, H4, W4, c_out)[:B]
    return out.transpose(0, 3, 1, 2)                              # back to NCHW


# --------------------------------------------------------------------------
# Pure-JAX reference (matches the PyTorch module exactly, f32)
# --------------------------------------------------------------------------
def reference(x_nchw, w1, b1, w2, b2):
    dn = ('NCHW', 'OIHW', 'NCHW')
    y = lax.conv_general_dilated(x_nchw, w1, (1, 1), ((1, 1), (1, 1)),
                                 dimension_numbers=dn)
    y = y + b1[None, :, None, None]
    y = y * jax.nn.sigmoid(y)                                     # SiLU
    y = lax.reduce_window(y, -jnp.inf, lax.max, (1, 1, 2, 2), (1, 1, 2, 2), 'VALID')
    y = lax.reduce_window(y, -jnp.inf, lax.max, (1, 1, 2, 2), (1, 1, 2, 2), 'VALID')
    y = lax.conv_general_dilated(y, w2, (1, 1), ((1, 1), (1, 1)),
                                 dimension_numbers=dn)
    return y + b2[None, :, None, None]


if __name__ == "__main__":
    key = jax.random.PRNGKey(0)
    k1, k2, k3, k4, k5 = jax.random.split(key, 5)

    B = 2
    out_channels = 8
    edge_map = jax.random.normal(k1, (B, 1, H, W), jnp.float32)

    # deterministic synthetic parameters (shapes from the module's __init__)
    w1 = jax.random.normal(k2, (C1, 1, 3, 3), jnp.float32) * 0.3
    b1 = jax.random.normal(k3, (C1,), jnp.float32) * 0.1
    w2 = jax.random.normal(k4, (out_channels, C1, 3, 3), jnp.float32) * 0.1
    b2 = jax.random.normal(k5, (out_channels,), jnp.float32) * 0.1

    # one-time host-side weight re-layout, reused for every forward call
    w1t, w2t, b2r = prepare_edge_encoder_params(w1, b1, w2, b2)
    fwd = jax.jit(lambda em: edge_encoder(em, w1t, w2t, b2r))

    out = jax.block_until_ready(fwd(edge_map))
    ref = reference(edge_map, w1, b1, w2, b2)
    assert out.shape == ref.shape == (B, out_channels, H4, W4)
    # bf16 inputs/weights with f32 accumulation -> relaxed tolerance
    np.testing.assert_allclose(np.asarray(out), np.asarray(ref),
                               atol=3e-2, rtol=3e-2)

    # second check: odd batch -> exercises batch padding / garbage-row slice-off
    B2 = 5
    em2 = jax.random.normal(jax.random.PRNGKey(1), (B2, 1, H, W), jnp.float32)
    out2 = jax.block_until_ready(fwd(em2))
    ref2 = reference(em2, w1, b1, w2, b2)
    np.testing.assert_allclose(np.asarray(out2), np.asarray(ref2),
                               atol=3e-2, rtol=3e-2)

    print("KERNEL_OK")
</pallas_src>

<mosaic_0001>
module attributes {stable_mosaic.version = 11 : i64} {
  func.func @edge_encoder_kernel(%arg0: i32, %arg1: memref<1x8x16x56xbf16, #tpu.memory_space<vmem>>, %arg2: memref<56x512xbf16, #tpu.memory_space<vmem>>, %arg3: memref<512x128xbf16, #tpu.memory_space<vmem>>, %arg4: memref<1x128xf32, #tpu.memory_space<vmem>>, %arg5: memref<1x8x128xf32, #tpu.memory_space<vmem>>) attributes {dimension_semantics = [#tpu.dimension_semantics<parallel>], iteration_bounds = array<i64: 1>, scalar_prefetch = 0 : i64, scratch_operands = 0 : i64, tpu.core_type = #tpu.core_type<tc>, window_params = [{transform_indices = @transform_0, window_bounds = array<i64: 1, 8, 16, 56>}, {pipeline_mode = #tpu.pipeline_mode<synchronous>, transform_indices = @transform_1, window_bounds = array<i64: 56, 512>}, {pipeline_mode = #tpu.pipeline_mode<synchronous>, transform_indices = @transform_2, window_bounds = array<i64: 512, 128>}, {pipeline_mode = #tpu.pipeline_mode<synchronous>, transform_indices = @transform_3, window_bounds = array<i64: 1, 128>}, {transform_indices = @transform_4, window_bounds = array<i64: 1, 8, 128>}]} {
    %c0 = arith.constant 0 : index
    %c0_0 = arith.constant 0 : index
    %c0_1 = arith.constant 0 : index
    %c0_2 = arith.constant 0 : index
    %0 = vector.load %arg1[%c0, %c0_0, %c0_1, %c0_2] : memref<1x8x16x56xbf16, #tpu.memory_space<vmem>>, vector<1x8x16x56xbf16>
    %1 = vector.shape_cast %0 : vector<1x8x16x56xbf16> to vector<8x16x56xbf16>
    %2 = vector.shape_cast %1 : vector<8x16x56xbf16> to vector<128x56xbf16>
    %c0_3 = arith.constant 0 : index
    %c0_4 = arith.constant 0 : index
    %3 = vector.load %arg2[%c0_3, %c0_4] : memref<56x512xbf16, #tpu.memory_space<vmem>>, vector<56x512xbf16>
    %cst = arith.constant dense<0.000000e+00> : vector<128x512xf32>
    %4 = tpu.matmul %2, %3, %cst {dimension_numbers = #tpu.dot_dimension_numbers<[1], [0], [0], [1], [0, 0, 1, 1], [], []>} : vector<128x56xbf16>, vector<56x512xbf16>, vector<128x512xf32> -> vector<128x512xf32>
    %cst_5 = arith.constant 0.000000e+00 : f32
    %5 = vector.broadcast %cst_5 : f32 to vector<128x512xf32>
    %6 = arith.subf %5, %4 : vector<128x512xf32>
    %7 = math.exp %6 : vector<128x512xf32>
    %cst_6 = arith.constant 1.000000e+00 : f32
    %8 = vector.broadcast %cst_6 : f32 to vector<128x512xf32>
    %9 = arith.addf %8, %7 : vector<128x512xf32>
    %10 = tpu.reciprocal %9 {approx = true} : vector<128x512xf32> -> vector<128x512xf32>
    %11 = arith.mulf %4, %10 : vector<128x512xf32>
    %12 = vector.extract_strided_slice %11 {offsets = [0, 0], sizes = [128, 128], strides = [1, 1]} : vector<128x512xf32> to vector<128x128xf32>
    %13 = vector.extract_strided_slice %11 {offsets = [0, 128], sizes = [128, 128], strides = [1, 1]} : vector<128x512xf32> to vector<128x128xf32>
    %14 = arith.maximumf %12, %13 : vector<128x128xf32>
    %15 = vector.extract_strided_slice %11 {offsets = [0, 256], sizes = [128, 128], strides = [1, 1]} : vector<128x512xf32> to vector<128x128xf32>
    %16 = vector.extract_strided_slice %11 {offsets = [0, 384], sizes = [128, 128], strides = [1, 1]} : vector<128x512xf32> to vector<128x128xf32>
    %17 = arith.maximumf %15, %16 : vector<128x128xf32>
    %18 = arith.maximumf %14, %17 : vector<128x128xf32>
    %19 = vector.shape_cast %18 : vector<128x128xf32> to vector<32x4x128xf32>
    %cst_7 = arith.constant dense<0xFF800000> : vector<32x128xf32>
    %20 = vector.multi_reduction <maximumf>, %19, %cst_7 [1] : vector<32x4x128xf32> to vector<32x128xf32>
    %21 = vector.shape_cast %20 : vector<32x128xf32> to vector<8x512xf32>
    %22 = arith.truncf %21 : vector<8x512xf32> to vector<8x512xbf16>
    %c0_8 = arith.constant 0 : index
    %c0_9 = arith.constant 0 : index
    %23 = vector.load %arg3[%c0_8, %c0_9] : memref<512x128xbf16, #tpu.memory_space<vmem>>, vector<512x128xbf16>
    %cst_10 = arith.constant dense<0.000000e+00> : vector<8x128xf32>
    %24 = tpu.matmul %22, %23, %cst_10 {dimension_numbers = #tpu.dot_dimension_numbers<[1], [0], [0], [1], [0, 0, 1, 1], [], []>} : vector<8x512xbf16>, vector<512x128xbf16>, vector<8x128xf32> -> vector<8x128xf32>
    %c0_11 = arith.constant 0 : index
    %c0_12 = arith.constant 0 : index
    %25 = vector.load %arg4[%c0_11, %c0_12] : memref<1x128xf32, #tpu.memory_space<vmem>>, vector<1x128xf32>
    %26 = vector.broadcast %25 : vector<1x128xf32> to vector<8x128xf32>
    %27 = arith.addf %24, %26 : vector<8x128xf32>
    %c0_13 = arith.constant 0 : index
    %c0_14 = arith.constant 0 : index
    %c0_15 = arith.constant 0 : index
    %28 = vector.load %arg5[%c0_13, %c0_14, %c0_15] : memref<1x8x128xf32, #tpu.memory_space<vmem>>, vector<1x8x128xf32>
    %29 = vector.shape_cast %28 : vector<1x8x128xf32> to vector<8x128xf32>
    %30 = vector.shape_cast %27 : vector<8x128xf32> to vector<1x8x128xf32>
    tpu.vector_store %arg5[%c0_13, %c0_14, %c0_15], %30 {strides = array<i32>} : memref<1x8x128xf32, #tpu.memory_space<vmem>>, vector<1x8x128xf32>,
    return
  }
  func.func @transform_0(%arg0: i32) -> (i32, i32, i32, i32) {
    %c0_i32 = arith.constant 0 : i32
    %c0_i32_0 = arith.constant 0 : i32
    %c0_i32_1 = arith.constant 0 : i32
    %c0_i32_2 = arith.constant 0 : i32
    return %arg0, %c0_i32, %c0_i32_0, %c0_i32_1 : i32, i32, i32, i32
  }
  func.func @transform_1(%arg0: i32) -> (i32, i32) {
    %c0_i32 = arith.constant 0 : i32
    %c0_i32_0 = arith.constant 0 : i32
    %c0_i32_1 = arith.constant 0 : i32
    return %c0_i32, %c0_i32_0 : i32, i32
  }
  func.func @transform_2(%arg0: i32) -> (i32, i32) {
    %c0_i32 = arith.constant 0 : i32
    %c0_i32_0 = arith.constant 0 : i32
    %c0_i32_1 = arith.constant 0 : i32
    return %c0_i32, %c0_i32_0 : i32, i32
  }
  func.func @transform_3(%arg0: i32) -> (i32, i32) {
    %c0_i32 = arith.constant 0 : i32
    %c0_i32_0 = arith.constant 0 : i32
    %c0_i32_1 = arith.constant 0 : i32
    return %c0_i32, %c0_i32_0 : i32, i32
  }
  func.func @transform_4(%arg0: i32) -> (i32, i32, i32) {
    %c0_i32 = arith.constant 0 : i32
    %c0_i32_0 = arith.constant 0 : i32
    %c0_i32_1 = arith.constant 0 : i32
    return %arg0, %c0_i32, %c0_i32_0 : i32, i32, i32
  }
}

</mosaic_0001>

<llo_original>
// kernel: _lambda_.1
$region0: #{_lambda_.1}
  #allocation0 [shape = 'u32[]', space=smem, size = 0x4, offset = 0x4, fixed_abs, tag = 'smem constant byte address 0x4 - core index']
  #allocation1 [shape = 'u32[72,128]{1,0:T(1,128)}', space=vmem, size = 0x9000, scoped, tag = 'internal scratch']
  %s0 = inlined_call_operand.vmem [shape: bf16[1,8,16,56], index: 0, kind: input, shape index: {}]
  %s1 = inlined_call_operand.vmem [shape: bf16[56,512], index: 1, kind: input, shape index: {}]
  %s2 = inlined_call_operand.vmem [shape: bf16[512,128], index: 2, kind: input, shape index: {}]
  %s3 = inlined_call_operand.vmem [shape: f32[1,128], index: 3, kind: input, shape index: {}]
  %s4 = inlined_call_operand.vmem [shape: f32[1,8,128], index: 4, kind: output, shape index: {}]
  %s5 = sld [smem:[#allocation0]]
  $region26: #{_lambda_.1} parent=0
    _
  %s7 = ssub.s32 1, %s5
  %s8 = scalar_select 0, %s7, %s5
  // Predicated region
  $region2: #{_lambda_.1} parent=0 // pred_check
    _
  $region3: #{_lambda_.1} parent=0 // pred_check_branch
    %10 = sbr.rel (0) target = $region5
  $region4: #{_lambda_.1} parent=0 // pred_region
    _
  $region5: #{_lambda_.1} parent=0 // pred_fallthru
    _
  // Predicated region
  $region6: #{_lambda_.1} parent=0 // pred_check
    _
  $region7: #{_lambda_.1} parent=0 // pred_check_branch
    %12 = sbr.rel (0) target = $region9
  $region8: #{_lambda_.1} parent=0 // pred_region
    _
  $region9: #{_lambda_.1} parent=0 // pred_fallthru
    _
  // Predicated region
  $region10: #{_lambda_.1} parent=0 // pred_check
    _
  $region11: #{_lambda_.1} parent=0 // pred_check_branch
    %14 = sbr.rel (0) target = $region13
  $region12: #{_lambda_.1} parent=0 // pred_region
    _
  $region13: #{_lambda_.1} parent=0 // pred_fallthru
    _
  // Predicated region
  $region14: #{_lambda_.1} parent=0 // pred_check
    _
  $region15: #{_lambda_.1} parent=0 // pred_check_branch
    %16 = sbr.rel (0) target = $region17
  $region16: #{_lambda_.1} parent=0 // pred_region
    _
  $region17: #{_lambda_.1} parent=0 // pred_fallthru
    _
  %v18 = vld [vmem:[%s0] sm:$0xf]
  %v19 = vld [vmem:[%s0 + $0x4] sm:$0xf]
  %v20 = vld [vmem:[%s0 + $0x8] sm:$0xf]
  %v21 = vld [vmem:[%s0 + $0xc] sm:$0xf]
  %v22 = vld [vmem:[%s0 + $0x10] sm:$0xf]
  %v23 = vld [vmem:[%s0 + $0x14] sm:$0xf]
  %v24 = vld [vmem:[%s0 + $0x18] sm:$0xf]
  %v25 = vld [vmem:[%s0 + $0x1c] sm:$0xf]
  %v26 = vld [vmem:[%s0 + $0x20] sm:$0xf]
  %v27 = vld [vmem:[%s0 + $0x24] sm:$0xf]
  %v28 = vld [vmem:[%s0 + $0x28] sm:$0xf]
  %v29 = vld [vmem:[%s0 + $0x2c] sm:$0xf]
  %v30 = vld [vmem:[%s0 + $0x30] sm:$0xf]
  %v31 = vld [vmem:[%s0 + $0x34] sm:$0xf]
  %v32 = vld [vmem:[%s0 + $0x38] sm:$0xf]
  %v33 = vld [vmem:[%s0 + $0x3c] sm:$0xf]
  %v34 = vld [vmem:[%s1] sm:$0xff]
  %v35 = vld [vmem:[%s1 + $0x8] sm:$0xff]
  %v36 = vld [vmem:[%s1 + $0x10] sm:$0xff]
  %v37 = vld [vmem:[%s1 + $0x18] sm:$0xff]
  %v38 = vld [vmem:[%s1 + $0x20] sm:$0xff]
  %v39 = vld [vmem:[%s1 + $0x28] sm:$0xff]
  %v40 = vld [vmem:[%s1 + $0x30] sm:$0xff]
  %v41 = vld [vmem:[%s1 + $0x38] sm:$0xff]
  %v42 = vld [vmem:[%s1 + $0x40] sm:$0xff]
  %v43 = vld [vmem:[%s1 + $0x48] sm:$0xff]
  %v44 = vld [vmem:[%s1 + $0x50] sm:$0xff]
  %v45 = vld [vmem:[%s1 + $0x58] sm:$0xff]
  %v46 = vld [vmem:[%s1 + $0x60] sm:$0xff]
  %v47 = vld [vmem:[%s1 + $0x68] sm:$0xff]
  %v64 = vunpack.c.l.b16 %v18
  %v65 = vunpack.c.l.b16 %v19
  %v66 = vunpack.c.l.b16 %v20
  %v67 = vunpack.c.l.b16 %v21
  %v68 = vunpack.c.l.b16 %v22
  %v69 = vunpack.c.l.b16 %v23
  %v70 = vunpack.c.l.b16 %v24
  %v71 = vunpack.c.l.b16 %v25
  %v72 = vunpack.c.l.b16 %v26
  %v73 = vunpack.c.l.b16 %v27
  %v74 = vunpack.c.l.b16 %v28
  %v75 = vunpack.c.l.b16 %v29
  %v76 = vunpack.c.l.b16 %v30
  %v77 = vunpack.c.l.b16 %v31
  %v78 = vunpack.c.l.b16 %v32
  %v79 = vunpack.c.l.b16 %v33
  %v80 = vpack.c.b16 %v65, %v64
  %v81 = vpack.c.b16 %v67, %v66
  %v82 = vpack.c.b16 %v69, %v68
  %v83 = vpack.c.b16 %v71, %v70
  %v84 = vpack.c.b16 %v73, %v72
  %v85 = vpack.c.b16 %v75, %v74
  %v86 = vpack.c.b16 %v77, %v76
  %v87 = vpack.c.b16 %v79, %v78
  %v102 = vunpack.c.l.b16 %v34
  %v103 = vunpack.c.h.b16 %v34
  %v104 = vunpack.c.l.b16 %v35
  %v105 = vunpack.c.h.b16 %v35
  %v106 = vunpack.c.l.b16 %v36
  %v107 = vunpack.c.h.b16 %v36
  %v108 = vunpack.c.l.b16 %v37
  %v109 = vunpack.c.h.b16 %v37
  %v110 = vunpack.c.l.b16 %v38
  %v111 = vunpack.c.h.b16 %v38
  %v112 = vunpack.c.l.b16 %v39
  %v113 = vunpack.c.h.b16 %v39
  %v114 = vunpack.c.l.b16 %v40
  %v115 = vunpack.c.h.b16 %v40
  %v116 = vunpack.c.l.b16 %v41
  %v117 = vunpack.c.h.b16 %v41
  %v118 = vunpack.c.l.b16 %v42
  %v119 = vunpack.c.h.b16 %v42
  %v120 = vunpack.c.l.b16 %v43
  %v121 = vunpack.c.h.b16 %v43
  %v122 = vunpack.c.l.b16 %v44
  %v123 = vunpack.c.h.b16 %v44
  %v124 = vunpack.c.l.b16 %v45
  %v125 = vunpack.c.h.b16 %v45
  %v126 = vunpack.c.l.b16 %v46
  %v127 = vunpack.c.h.b16 %v46
  %v128 = vunpack.c.l.b16 %v47
  %v129 = vunpack.c.h.b16 %v47
  %v130 = vpack.c.b16 %v106, %v102
  %v131 = vpack.c.b16 %v107, %v103
  %v132 = vpack.c.b16 %v108, %v104
  %v133 = vpack.c.b16 %v109, %v105
  %v134 = vpack.c.b16 %v114, %v110
  %v135 = vpack.c.b16 %v115, %v111
  %v136 = vpack.c.b16 %v116, %v112
  %v137 = vpack.c.b16 %v117, %v113
  %v138 = vpack.c.b16 %v122, %v118
  %v139 = vpack.c.b16 %v123, %v119
  %v140 = vpack.c.b16 %v124, %v120
  %v141 = vpack.c.b16 %v125, %v121
  %v142 = vpack.c.b16 %v126, %v126
  %v143 = vpack.c.b16 %v127, %v127
  %v144 = vpack.c.b16 %v128, %v128
  %v145 = vpack.c.b16 %v129, %v129
  %vm158 = vcmask 457728
  %v160 = vsel %vm158, %v80, 0
  %v163 = vsel %vm158, %v81, 0
  %v166 = vsel %vm158, %v82, 0
  %v169 = vsel %vm158, %v83, 0
  %v172 = vsel %vm158, %v84, 0
  %v175 = vsel %vm158, %v85, 0
  %v178 = vsel %vm158, %v86, 0
  %v181 = vsel %vm158, %v87, 0
  %vm183 = vcmask 1043456
  %v185 = vsel %vm183, %v142, 0
  %v188 = vsel %vm183, %v143, 0
  %v191 = vsel %vm183, %v144, 0
  %v194 = vsel %vm183, %v145, 0
  %196 = vmatpush.bf16.msra.mxu0 0
  %197 = vmatpush.bf16.msra.mxu0 0
  %198 = vmatpush.bf16.msra.mxu0 0
  %199 = vmatpush.bf16.msra.mxu0 0
  %200 = vmatpush.bf16.msra.mxu0 %v185
  %201 = vmatpush.bf16.msra.mxu0 %v138
  %202 = vmatpush.bf16.msra.mxu0 %v134
  %203 = vmatpush.bf16.msra.mxu0 %v130
  %204 = vmatmul.bf16.gmra.mxu0 %v160
  %v205 = vpop.f32.mrf.mxu0
  %v206 = vadd.f32 0.0, %v205
  %v207 = vpop.f32.mrf.mxu0
  %v208 = vadd.f32 0.0, %v207
  %209 = vmatmul.bf16.gmra.mxu0 %v163
  %v210 = vpop.f32.mrf.mxu0
  %v211 = vadd.f32 0.0, %v210
  %v212 = vpop.f32.mrf.mxu0
  %v213 = vadd.f32 0.0, %v212
  %214 = vmatmul.bf16.gmra.mxu0 %v166
  %v215 = vpop.f32.mrf.mxu0
  %v216 = vadd.f32 0.0, %v215
  %v217 = vpop.f32.mrf.mxu0
  %v218 = vadd.f32 0.0, %v217
  %219 = vmatmul.bf16.gmra.mxu0 %v169
  %v220 = vpop.f32.mrf.mxu0
  %v221 = vadd.f32 0.0, %v220
  %v222 = vpop.f32.mrf.mxu0
  %v223 = vadd.f32 0.0, %v222
  %224 = vmatmul.bf16.gmra.mxu0 %v172
  %v225 = vpop.f32.mrf.mxu0
  %v226 = vadd.f32 0.0, %v225
  %v227 = vpop.f32.mrf.mxu0
  %v228 = vadd.f32 0.0, %v227
  %229 = vmatmul.bf16.gmra.mxu0 %v175
  %v230 = vpop.f32.mrf.mxu0
  %v231 = vadd.f32 0.0, %v230
  %v232 = vpop.f32.mrf.mxu0
  %v233 = vadd.f32 0.0, %v232
  %234 = vmatmul.bf16.gmra.mxu0 %v178
  %v235 = vpop.f32.mrf.mxu0
  %v236 = vadd.f32 0.0, %v235
  %v237 = vpop.f32.mrf.mxu0
  %v238 = vadd.f32 0.0, %v237
  %239 = vmatmul.bf16.gmra.mxu0 %v181
  %v240 = vpop.f32.mrf.mxu0
  %v241 = vadd.f32 0.0, %v240
  %v242 = vpop.f32.mrf.mxu0
  %v243 = vadd.f32 0.0, %v242
  %244 = vdwg.mxu0
  %245 = vmatpush.bf16.msra.mxu0 0
  %246 = vmatpush.bf16.msra.mxu0 0
  %247 = vmatpush.bf16.msra.mxu0 0
  %248 = vmatpush.bf16.msra.mxu0 0
  %249 = vmatpush.bf16.msra.mxu0 %v188
  %250 = vmatpush.bf16.msra.mxu0 %v139
  %251 = vmatpush.bf16.msra.mxu0 %v135
  %252 = vmatpush.bf16.msra.mxu0 %v131
  %253 = vmatmul.bf16.gmra.mxu0 %v160
  %v254 = vpop.f32.mrf.mxu0
  %v255 = vadd.f32 0.0, %v254
  %v256 = vpop.f32.mrf.mxu0
  %v257 = vadd.f32 0.0, %v256
  %258 = vmatmul.bf16.gmra.mxu0 %v163
  %v259 = vpop.f32.mrf.mxu0
  %v260 = vadd.f32 0.0, %v259
  %v261 = vpop.f32.mrf.mxu0
  %v262 = vadd.f32 0.0, %v261
  %263 = vmatmul.bf16.gmra.mxu0 %v166
  %v264 = vpop.f32.mrf.mxu0
  %v265 = vadd.f32 0.0, %v264
  %v266 = vpop.f32.mrf.mxu0
  %v267 = vadd.f32 0.0, %v266
  %268 = vmatmul.bf16.gmra.mxu0 %v169
  %v269 = vpop.f32.mrf.mxu0
  %v270 = vadd.f32 0.0, %v269
  %v271 = vpop.f32.mrf.mxu0
  %v272 = vadd.f32 0.0, %v271
  %273 = vmatmul.bf16.gmra.mxu0 %v172
  %v274 = vpop.f32.mrf.mxu0
  %v275 = vadd.f32 0.0, %v274
  %v276 = vpop.f32.mrf.mxu0
  %v277 = vadd.f32 0.0, %v276
  %278 = vmatmul.bf16.gmra.mxu0 %v175
  %v279 = vpop.f32.mrf.mxu0
  %v280 = vadd.f32 0.0, %v279
  %v281 = vpop.f32.mrf.mxu0
  %v282 = vadd.f32 0.0, %v281
  %283 = vmatmul.bf16.gmra.mxu0 %v178
  %v284 = vpop.f32.mrf.mxu0
  %v285 = vadd.f32 0.0, %v284
  %v286 = vpop.f32.mrf.mxu0
  %v287 = vadd.f32 0.0, %v286
  %288 = vmatmul.bf16.gmra.mxu0 %v181
  %v289 = vpop.f32.mrf.mxu0
  %v290 = vadd.f32 0.0, %v289
  %v291 = vpop.f32.mrf.mxu0
  %v292 = vadd.f32 0.0, %v291
  %293 = vdwg.mxu0
  %294 = vmatpush.bf16.msra.mxu0 0
  %295 = vmatpush.bf16.msra.mxu0 0
  %296 = vmatpush.bf16.msra.mxu0 0
  %297 = vmatpush.bf16.msra.mxu0 0
  %298 = vmatpush.bf16.msra.mxu0 %v191
  %299 = vmatpush.bf16.msra.mxu0 %v140
  %300 = vmatpush.bf16.msra.mxu0 %v136
  %301 = vmatpush.bf16.msra.mxu0 %v132
  %302 = vmatmul.bf16.gmra.mxu0 %v160
  %v303 = vpop.f32.mrf.mxu0
  %v304 = vadd.f32 0.0, %v303
  %v305 = vpop.f32.mrf.mxu0
  %v306 = vadd.f32 0.0, %v305
  %307 = vmatmul.bf16.gmra.mxu0 %v163
  %v308 = vpop.f32.mrf.mxu0
  %v309 = vadd.f32 0.0, %v308
  %v310 = vpop.f32.mrf.mxu0
  %v311 = vadd.f32 0.0, %v310
  %312 = vmatmul.bf16.gmra.mxu0 %v166
  %v313 = vpop.f32.mrf.mxu0
  %v314 = vadd.f32 0.0, %v313
  %v315 = vpop.f32.mrf.mxu0
  %v316 = vadd.f32 0.0, %v315
  %317 = vmatmul.bf16.gmra.mxu0 %v169
  %v318 = vpop.f32.mrf.mxu0
  %v319 = vadd.f32 0.0, %v318
  %v320 = vpop.f32.mrf.mxu0
  %v321 = vadd.f32 0.0, %v320
  %322 = vmatmul.bf16.gmra.mxu0 %v172
  %v323 = vpop.f32.mrf.mxu0
  %v324 = vadd.f32 0.0, %v323
  %v325 = vpop.f32.mrf.mxu0
  %v326 = vadd.f32 0.0, %v325
  %327 = vmatmul.bf16.gmra.mxu0 %v175
  %v328 = vpop.f32.mrf.mxu0
  %v329 = vadd.f32 0.0, %v328
  %v330 = vpop.f32.mrf.mxu0
  %v331 = vadd.f32 0.0, %v330
  %332 = vmatmul.bf16.gmra.mxu0 %v178
  %v333 = vpop.f32.mrf.mxu0
  %v334 = vadd.f32 0.0, %v333
  %v335 = vpop.f32.mrf.mxu0
  %v336 = vadd.f32 0.0, %v335
  %337 = vmatmul.bf16.gmra.mxu0 %v181
  %v338 = vpop.f32.mrf.mxu0
  %v339 = vadd.f32 0.0, %v338
  %v340 = vpop.f32.mrf.mxu0
  %v341 = vadd.f32 0.0, %v340
  %342 = vdwg.mxu0
  %343 = vmatpush.bf16.msra.mxu0 0
  %344 = vmatpush.bf16.msra.mxu0 0
  %345 = vmatpush.bf16.msra.mxu0 0
  %346 = vmatpush.bf16.msra.mxu0 0
  %347 = vmatpush.bf16.msra.mxu0 %v194
  %348 = vmatpush.bf16.msra.mxu0 %v141
  %349 = vmatpush.bf16.msra.mxu0 %v137
  %350 = vmatpush.bf16.msra.mxu0 %v133
  %351 = vmatmul.bf16.gmra.mxu0 %v160
  %v352 = vpop.f32.mrf.mxu0
  %v353 = vadd.f32 0.0, %v352
  %v354 = vpop.f32.mrf.mxu0
  %v355 = vadd.f32 0.0, %v354
  %356 = vmatmul.bf16.gmra.mxu0 %v163
  %v357 = vpop.f32.mrf.mxu0
  %v358 = vadd.f32 0.0, %v357
  %v359 = vpop.f32.mrf.mxu0
  %v360 = vadd.f32 0.0, %v359
  %361 = vmatmul.bf16.gmra.mxu0 %v166
  %v362 = vpop.f32.mrf.mxu0
  %v363 = vadd.f32 0.0, %v362
  %v364 = vpop.f32.mrf.mxu0
  %v365 = vadd.f32 0.0, %v364
  %366 = vmatmul.bf16.gmra.mxu0 %v169
  %v367 = vpop.f32.mrf.mxu0
  %v368 = vadd.f32 0.0, %v367
  %v369 = vpop.f32.mrf.mxu0
  %v370 = vadd.f32 0.0, %v369
  %371 = vmatmul.bf16.gmra.mxu0 %v172
  %v372 = vpop.f32.mrf.mxu0
  %v373 = vadd.f32 0.0, %v372
  %v374 = vpop.f32.mrf.mxu0
  %v375 = vadd.f32 0.0, %v374
  %376 = vmatmul.bf16.gmra.mxu0 %v175
  %v377 = vpop.f32.mrf.mxu0
  %v378 = vadd.f32 0.0, %v377
  %v379 = vpop.f32.mrf.mxu0
  %v380 = vadd.f32 0.0, %v379
  %381 = vmatmul.bf16.gmra.mxu0 %v178
  %v382 = vpop.f32.mrf.mxu0
  %v383 = vadd.f32 0.0, %v382
  %v384 = vpop.f32.mrf.mxu0
  %v385 = vadd.f32 0.0, %v384
  %386 = vmatmul.bf16.gmra.mxu0 %v181
  %v387 = vpop.f32.mrf.mxu0
  %v388 = vadd.f32 0.0, %v387
  %v389 = vpop.f32.mrf.mxu0
  %v390 = vadd.f32 0.0, %v389
  %391 = vdwg.mxu0
  %v392 = vsub.f32 0.0, %v206
  %v393 = vsub.f32 0.0, %v255
  %v394 = vsub.f32 0.0, %v304
  %v395 = vsub.f32 0.0, %v353
  %v396 = vsub.f32 0.0, %v208
  %v397 = vsub.f32 0.0, %v257
  %v398 = vsub.f32 0.0, %v306
  %v399 = vsub.f32 0.0, %v355
  %v400 = vsub.f32 0.0, %v211
  %v401 = vsub.f32 0.0, %v260
  %v402 = vsub.f32 0.0, %v309
  %v403 = vsub.f32 0.0, %v358
  %v404 = vsub.f32 0.0, %v213
  %v405 = vsub.f32 0.0, %v262
  %v406 = vsub.f32 0.0, %v311
  %v407 = vsub.f32 0.0, %v360
  %v408 = vsub.f32 0.0, %v216
  %v409 = vsub.f32 0.0, %v265
  %v410 = vsub.f32 0.0, %v314
  %v411 = vsub.f32 0.0, %v363
  %v412 = vsub.f32 0.0, %v218
  %v413 = vsub.f32 0.0, %v267
  %v414 = vsub.f32 0.0, %v316
  %v415 = vsub.f32 0.0, %v365
  %v416 = vsub.f32 0.0, %v221
  %v417 = vsub.f32 0.0, %v270
  %v418 = vsub.f32 0.0, %v319
  %v419 = vsub.f32 0.0, %v368
  %v420 = vsub.f32 0.0, %v223
  %v421 = vsub.f32 0.0, %v272
  %v422 = vsub.f32 0.0, %v321
  %v423 = vsub.f32 0.0, %v370
  %v424 = vsub.f32 0.0, %v226
  %v425 = vsub.f32 0.0, %v275
  %v426 = vsub.f32 0.0, %v324
  %v427 = vsub.f32 0.0, %v373
  %v428 = vsub.f32 0.0, %v228
  %v429 = vsub.f32 0.0, %v277
  %v430 = vsub.f32 0.0, %v326
  %v431 = vsub.f32 0.0, %v375
  %v432 = vsub.f32 0.0, %v231
  %v433 = vsub.f32 0.0, %v280
  %v434 = vsub.f32 0.0, %v329
  %v435 = vsub.f32 0.0, %v378
  %v436 = vsub.f32 0.0, %v233
  %v437 = vsub.f32 0.0, %v282
  %v438 = vsub.f32 0.0, %v331
  %v439 = vsub.f32 0.0, %v380
  %v440 = vsub.f32 0.0, %v236
  %v441 = vsub.f32 0.0, %v285
  %v442 = vsub.f32 0.0, %v334
  %v443 = vsub.f32 0.0, %v383
  %v444 = vsub.f32 0.0, %v238
  %v445 = vsub.f32 0.0, %v287
  %v446 = vsub.f32 0.0, %v336
  %v447 = vsub.f32 0.0, %v385
  %v448 = vsub.f32 0.0, %v241
  %v449 = vsub.f32 0.0, %v290
  %v450 = vsub.f32 0.0, %v339
  %v451 = vsub.f32 0.0, %v388
  %v452 = vsub.f32 0.0, %v243
  %v453 = vsub.f32 0.0, %v292
  %v454 = vsub.f32 0.0, %v341
  %v455 = vsub.f32 0.0, %v390
  %v456 = vmul.f32 %v392, 1.442695
  %v457 = vpow.pop %v456
  %v458 = vmul.f32 %v393, 1.442695
  %v459 = vpow.pop %v458
  %v460 = vmul.f32 %v394, 1.442695
  %v461 = vpow.pop %v460
  %v462 = vmul.f32 %v395, 1.442695
  %v463 = vpow.pop %v462
  %v464 = vmul.f32 %v396, 1.442695
  %v465 = vpow.pop %v464
  %v466 = vmul.f32 %v397, 1.442695
  %v467 = vpow.pop %v466
  %v468 = vmul.f32 %v398, 1.442695
  %v469 = vpow.pop %v468
  %v470 = vmul.f32 %v399, 1.442695
  %v471 = vpow.pop %v470
  %v472 = vmul.f32 %v400, 1.442695
  %v473 = vpow.pop %v472
  %v474 = vmul.f32 %v401, 1.442695
  %v475 = vpow.pop %v474
  %v476 = vmul.f32 %v402, 1.442695
  %v477 = vpow.pop %v476
  %v478 = vmul.f32 %v403, 1.442695
  %v479 = vpow.pop %v478
  %v480 = vmul.f32 %v404, 1.442695
  %v481 = vpow.pop %v480
  %v482 = vmul.f32 %v405, 1.442695
  %v483 = vpow.pop %v482
  %v484 = vmul.f32 %v406, 1.442695
  %v485 = vpow.pop %v484
  %v486 = vmul.f32 %v407, 1.442695
  %v487 = vpow.pop %v486
  %v488 = vmul.f32 %v408, 1.442695
  %v489 = vpow.pop %v488
  %v490 = vmul.f32 %v409, 1.442695
  %v491 = vpow.pop %v490
  %v492 = vmul.f32 %v410, 1.442695
  %v493 = vpow.pop %v492
  %v494 = vmul.f32 %v411, 1.442695
  %v495 = vpow.pop %v494
  %v496 = vmul.f32 %v412, 1.442695
  %v497 = vpow.pop %v496
  %v498 = vmul.f32 %v413, 1.442695
  %v499 = vpow.pop %v498
  %v500 = vmul.f32 %v414, 1.442695
  %v501 = vpow.pop %v500
  %v502 = vmul.f32 %v415, 1.442695
  %v503 = vpow.pop %v502
  %v504 = vmul.f32 %v416, 1.442695
  %v505 = vpow.pop %v504
  %v506 = vmul.f32 %v417, 1.442695
  %v507 = vpow.pop %v506
  %v508 = vmul.f32 %v418, 1.442695
  %v509 = vpow.pop %v508
  %v510 = vmul.f32 %v419, 1.442695
  %v511 = vpow.pop %v510
  %v512 = vmul.f32 %v420, 1.442695
  %v513 = vpow.pop %v512
  %v514 = vmul.f32 %v421, 1.442695
  %v515 = vpow.pop %v514
  %v516 = vmul.f32 %v422, 1.442695
  %v517 = vpow.pop %v516
  %v518 = vmul.f32 %v423, 1.442695
  %v519 = vpow.pop %v518
  %v520 = vmul.f32 %v424, 1.442695
  %v521 = vpow.pop %v520
  %v522 = vmul.f32 %v425, 1.442695
  %v523 = vpow.pop %v522
  %v524 = vmul.f32 %v426, 1.442695
  %v525 = vpow.pop %v524
  %v526 = vmul.f32 %v427, 1.442695
  %v527 = vpow.pop %v526
  %v528 = vmul.f32 %v428, 1.442695
  %v529 = vpow.pop %v528
  %v530 = vmul.f32 %v429, 1.442695
  %v531 = vpow.pop %v530
  %v532 = vmul.f32 %v430, 1.442695
  %v533 = vpow.pop %v532
  %v534 = vmul.f32 %v431, 1.442695
  %v535 = vpow.pop %v534
  %v536 = vmul.f32 %v432, 1.442695
  %v537 = vpow.pop %v536
  %v538 = vmul.f32 %v433, 1.442695
  %v539 = vpow.pop %v538
  %v540 = vmul.f32 %v434, 1.442695
  %v541 = vpow.pop %v540
  %v542 = vmul.f32 %v435, 1.442695
  %v543 = vpow.pop %v542
  %v544 = vmul.f32 %v436, 1.442695
  %v545 = vpow.pop %v544
  %v546 = vmul.f32 %v437, 1.442695
  %v547 = vpow.pop %v546
  %v548 = vmul.f32 %v438, 1.442695
  %v549 = vpow.pop %v548
  %v550 = vmul.f32 %v439, 1.442695
  %v551 = vpow.pop %v550
  %v552 = vmul.f32 %v440, 1.442695
  %v553 = vpow.pop %v552
  %v554 = vmul.f32 %v441, 1.442695
  %v555 = vpow.pop %v554
  %v556 = vmul.f32 %v442, 1.442695
  %v557 = vpow.pop %v556
  %v558 = vmul.f32 %v443, 1.442695
  %v559 = vpow.pop %v558
  %v560 = vmul.f32 %v444, 1.442695
  %v561 = vpow.pop %v560
  %v562 = vmul.f32 %v445, 1.442695
  %v563 = vpow.pop %v562
  %v564 = vmul.f32 %v446, 1.442695
  %v565 = vpow.pop %v564
  %v566 = vmul.f32 %v447, 1.442695
  %v567 = vpow.pop %v566
  %v568 = vmul.f32 %v448, 1.442695
  %v569 = vpow.pop %v568
  %v570 = vmul.f32 %v449, 1.442695
  %v571 = vpow.pop %v570
  %v572 = vmul.f32 %v450, 1.442695
  %v573 = vpow.pop %v572
  %v574 = vmul.f32 %v451, 1.442695
  %v575 = vpow.pop %v574
  %v576 = vmul.f32 %v452, 1.442695
  %v577 = vpow.pop %v576
  %v578 = vmul.f32 %v453, 1.442695
  %v579 = vpow.pop %v578
  %v580 = vmul.f32 %v454, 1.442695
  %v581 = vpow.pop %v580
  %v582 = vmul.f32 %v455, 1.442695
  %v583 = vpow.pop %v582
  %v584 = vadd.f32 %v457, 1.0
  %v585 = vadd.f32 %v459, 1.0
  %v586 = vadd.f32 %v461, 1.0
  %v587 = vadd.f32 %v463, 1.0
  %v588 = vadd.f32 %v465, 1.0
  %v589 = vadd.f32 %v467, 1.0
  %v590 = vadd.f32 %v469, 1.0
  %v591 = vadd.f32 %v471, 1.0
  %v592 = vadd.f32 %v473, 1.0
  %v593 = vadd.f32 %v475, 1.0
  %v594 = vadd.f32 %v477, 1.0
  %v595 = vadd.f32 %v479, 1.0
  %v596 = vadd.f32 %v481, 1.0
  %v597 = vadd.f32 %v483, 1.0
  %v598 = vadd.f32 %v485, 1.0
  %v599 = vadd.f32 %v487, 1.0
  %v600 = vadd.f32 %v489, 1.0
  %v601 = vadd.f32 %v491, 1.0
  %v602 = vadd.f32 %v493, 1.0
  %v603 = vadd.f32 %v495, 1.0
  %v604 = vadd.f32 %v497, 1.0
  %v605 = vadd.f32 %v499, 1.0
  %v606 = vadd.f32 %v501, 1.0
  %v607 = vadd.f32 %v503, 1.0
  %v608 = vadd.f32 %v505, 1.0
  %v609 = vadd.f32 %v507, 1.0
  %v610 = vadd.f32 %v509, 1.0
  %v611 = vadd.f32 %v511, 1.0
  %v612 = vadd.f32 %v513, 1.0
  %v613 = vadd.f32 %v515, 1.0
  %v614 = vadd.f32 %v517, 1.0
  %v615 = vadd.f32 %v519, 1.0
  %v616 = vadd.f32 %v521, 1.0
  %v617 = vadd.f32 %v523, 1.0
  %v618 = vadd.f32 %v525, 1.0
  %v619 = vadd.f32 %v527, 1.0
  %v620 = vadd.f32 %v529, 1.0
  %v621 = vadd.f32 %v531, 1.0
  %v622 = vadd.f32 %v533, 1.0
  %v623 = vadd.f32 %v535, 1.0
  %v624 = vadd.f32 %v537, 1.0
  %v625 = vadd.f32 %v539, 1.0
  %v626 = vadd.f32 %v541, 1.0
  %v627 = vadd.f32 %v543, 1.0
  %v628 = vadd.f32 %v545, 1.0
  %v629 = vadd.f32 %v547, 1.0
  %v630 = vadd.f32 %v549, 1.0
  %v631 = vadd.f32 %v551, 1.0
  %v632 = vadd.f32 %v553, 1.0
  %v633 = vadd.f32 %v555, 1.0
  %v634 = vadd.f32 %v557, 1.0
  %v635 = vadd.f32 %v559, 1.0
  %v636 = vadd.f32 %v561, 1.0
  %v637 = vadd.f32 %v563, 1.0
  %v638 = vadd.f32 %v565, 1.0
  %v639 = vadd.f32 %v567, 1.0
  %v640 = vadd.f32 %v569, 1.0
  %v641 = vadd.f32 %v571, 1.0
  %v642 = vadd.f32 %v573, 1.0
  %v643 = vadd.f32 %v575, 1.0
  %v644 = vadd.f32 %v577, 1.0
  %v645 = vadd.f32 %v579, 1.0
  %v646 = vadd.f32 %v581, 1.0
  %v647 = vadd.f32 %v583, 1.0
  %v648 = vrcp.pop %v584
  %v649 = vrcp.pop %v585
  %v650 = vrcp.pop %v586
  %v651 = vrcp.pop %v587
  %v652 = vrcp.pop %v588
  %v653 = vrcp.pop %v589
  %v654 = vrcp.pop %v590
  %v655 = vrcp.pop %v591
  %v656 = vrcp.pop %v592
  %v657 = vrcp.pop %v593
  %v658 = vrcp.pop %v594
  %v659 = vrcp.pop %v595
  %v660 = vrcp.pop %v596
  %v661 = vrcp.pop %v597
  %v662 = vrcp.pop %v598
  %v663 = vrcp.pop %v599
  %v664 = vrcp.pop %v600
  %v665 = vrcp.pop %v601
  %v666 = vrcp.pop %v602
  %v667 = vrcp.pop %v603
  %v668 = vrcp.pop %v604
  %v669 = vrcp.pop %v605
  %v670 = vrcp.pop %v606
  %v671 = vrcp.pop %v607
  %v672 = vrcp.pop %v608
  %v673 = vrcp.pop %v609
  %v674 = vrcp.pop %v610
  %v675 = vrcp.pop %v611
  %v676 = vrcp.pop %v612
  %v677 = vrcp.pop %v613
  %v678 = vrcp.pop %v614
  %v679 = vrcp.pop %v615
  %v680 = vrcp.pop %v616
  %v681 = vrcp.pop %v617
  %v682 = vrcp.pop %v618
  %v683 = vrcp.pop %v619
  %v684 = vrcp.pop %v620
  %v685 = vrcp.pop %v621
  %v686 = vrcp.pop %v622
  %v687 = vrcp.pop %v623
  %v688 = vrcp.pop %v624
  %v689 = vrcp.pop %v625
  %v690 = vrcp.pop %v626
  %v691 = vrcp.pop %v627
  %v692 = vrcp.pop %v628
  %v693 = vrcp.pop %v629
  %v694 = vrcp.pop %v630
  %v695 = vrcp.pop %v631
  %v696 = vrcp.pop %v632
  %v697 = vrcp.pop %v633
  %v698 = vrcp.pop %v634
  %v699 = vrcp.pop %v635
  %v700 = vrcp.pop %v636
  %v701 = vrcp.pop %v637
  %v702 = vrcp.pop %v638
  %v703 = vrcp.pop %v639
  %v704 = vrcp.pop %v640
  %v705 = vrcp.pop %v641
  %v706 = vrcp.pop %v642
  %v707 = vrcp.pop %v643
  %v708 = vrcp.pop %v644
  %v709 = vrcp.pop %v645
  %v710 = vrcp.pop %v646
  %v711 = vrcp.pop %v647
  %v712 = vmul.f32 %v206, %v648
  %v713 = vmul.f32 %v255, %v649
  %v714 = vmul.f32 %v304, %v650
  %v715 = vmul.f32 %v353, %v651
  %v716 = vmul.f32 %v208, %v652
  %v717 = vmul.f32 %v257, %v653
  %v718 = vmul.f32 %v306, %v654
  %v719 = vmul.f32 %v355, %v655
  %v720 = vmul.f32 %v211, %v656
  %v721 = vmul.f32 %v260, %v657
  %v722 = vmul.f32 %v309, %v658
  %v723 = vmul.f32 %v358, %v659
  %v724 = vmul.f32 %v213, %v660
  %v725 = vmul.f32 %v262, %v661
  %v726 = vmul.f32 %v311, %v662
  %v727 = vmul.f32 %v360, %v663
  %v728 = vmul.f32 %v216, %v664
  %v729 = vmul.f32 %v265, %v665
  %v730 = vmul.f32 %v314, %v666
  %v731 = vmul.f32 %v363, %v667
  %v732 = vmul.f32 %v218, %v668
  %v733 = vmul.f32 %v267, %v669
  %v734 = vmul.f32 %v316, %v670
  %v735 = vmul.f32 %v365, %v671
  %v736 = vmul.f32 %v221, %v672
  %v737 = vmul.f32 %v270, %v673
  %v738 = vmul.f32 %v319, %v674
  %v739 = vmul.f32 %v368, %v675
  %v740 = vmul.f32 %v223, %v676
  %v741 = vmul.f32 %v272, %v677
  %v742 = vmul.f32 %v321, %v678
  %v743 = vmul.f32 %v370, %v679
  %v744 = vmul.f32 %v226, %v680
  %v745 = vmul.f32 %v275, %v681
  %v746 = vmul.f32 %v324, %v682
  %v747 = vmul.f32 %v373, %v683
  %v748 = vmul.f32 %v228, %v684
  %v749 = vmul.f32 %v277, %v685
  %v750 = vmul.f32 %v326, %v686
  %v751 = vmul.f32 %v375, %v687
  %v752 = vmul.f32 %v231, %v688
  %v753 = vmul.f32 %v280, %v689
  %v754 = vmul.f32 %v329, %v690
  %v755 = vmul.f32 %v378, %v691
  %v756 = vmul.f32 %v233, %v692
  %v757 = vmul.f32 %v282, %v693
  %v758 = vmul.f32 %v331, %v694
  %v759 = vmul.f32 %v380, %v695
  %v760 = vmul.f32 %v236, %v696
  %v761 = vmul.f32 %v285, %v697
  %v762 = vmul.f32 %v334, %v698
  %v763 = vmul.f32 %v383, %v699
  %v764 = vmul.f32 %v238, %v700
  %v765 = vmul.f32 %v287, %v701
  %v766 = vmul.f32 %v336, %v702
  %v767 = vmul.f32 %v385, %v703
  %v768 = vmul.f32 %v241, %v704
  %v769 = vmul.f32 %v290, %v705
  %v770 = vmul.f32 %v339, %v706
  %v771 = vmul.f32 %v388, %v707
  %v772 = vmul.f32 %v243, %v708
  %v773 = vmul.f32 %v292, %v709
  %v774 = vmul.f32 %v341, %v710
  %v775 = vmul.f32 %v390, %v711
  %v776 = vmax.f32 %v712, %v713
  %v777 = vmax.f32 %v716, %v717
  %v778 = vmax.f32 %v720, %v721
  %v779 = vmax.f32 %v724, %v725
  %v780 = vmax.f32 %v728, %v729
  %v781 = vmax.f32 %v732, %v733
  %v782 = vmax.f32 %v736, %v737
  %v783 = vmax.f32 %v740, %v741
  %v784 = vmax.f32 %v744, %v745
  %v785 = vmax.f32 %v748, %v749
  %v786 = vmax.f32 %v752, %v753
  %v787 = vmax.f32 %v756, %v757
  %v788 = vmax.f32 %v760, %v761
  %v789 = vmax.f32 %v764, %v765
  %v790 = vmax.f32 %v768, %v769
  %v791 = vmax.f32 %v772, %v773
  %v792 = vmax.f32 %v714, %v715
  %v793 = vmax.f32 %v718, %v719
  %v794 = vmax.f32 %v722, %v723
  %v795 = vmax.f32 %v726, %v727
  %v796 = vmax.f32 %v730, %v731
  %v797 = vmax.f32 %v734, %v735
  %v798 = vmax.f32 %v738, %v739
  %v799 = vmax.f32 %v742, %v743
  %v800 = vmax.f32 %v746, %v747
  %v801 = vmax.f32 %v750, %v751
  %v802 = vmax.f32 %v754, %v755
  %v803 = vmax.f32 %v758, %v759
  %v804 = vmax.f32 %v762, %v763
  %v805 = vmax.f32 %v766, %v767
  %v806 = vmax.f32 %v770, %v771
  %v807 = vmax.f32 %v774, %v775
  %v808 = vmax.f32 %v776, %v792
  %v809 = vmax.f32 %v777, %v793
  %v810 = vmax.f32 %v778, %v794
  %v811 = vmax.f32 %v779, %v795
  %v812 = vmax.f32 %v780, %v796
  %v813 = vmax.f32 %v781, %v797
  %v814 = vmax.f32 %v782, %v798
  %v815 = vmax.f32 %v783, %v799
  %v816 = vmax.f32 %v784, %v800
  %v817 = vmax.f32 %v785, %v801
  %v818 = vmax.f32 %v786, %v802
  %v819 = vmax.f32 %v787, %v803
  %v820 = vmax.f32 %v788, %v804
  %v821 = vmax.f32 %v789, %v805
  %v822 = vmax.f32 %v790, %v806
  %v823 = vmax.f32 %v791, %v807
  %v840 = vrot.slane %v808, 4
  %v841 = vrot.slane %v809, 4
  %v842 = vrot.slane %v810, 4
  %v843 = vrot.slane %v811, 4
  %v844 = vrot.slane %v812, 4
  %v845 = vrot.slane %v813, 4
  %v846 = vrot.slane %v814, 4
  %v847 = vrot.slane %v815, 4
  %v848 = vrot.slane %v816, 4
  %v849 = vrot.slane %v817, 4
  %v850 = vrot.slane %v818, 4
  %v851 = vrot.slane %v819, 4
  %v852 = vrot.slane %v820, 4
  %v853 = vrot.slane %v821, 4
  %v854 = vrot.slane %v822, 4
  %v855 = vrot.slane %v823, 4
  %v872 = vsel %vm183, %v808, -inf
  %v873 = vrot.slane %v872, 4
  %v874 = vmax.f32 %v872, %v873
  %v875 = vrot.slane %v874, 2
  %v876 = vmax.f32 %v874, %v875
  %v877 = vrot.slane %v876, 1
  %v878 = vmax.f32 %v876, %v877
  %v879 = vsel %vm183, %v840, -inf
  %v880 = vrot.slane %v879, 4
  %v881 = vmax.f32 %v879, %v880
  %v882 = vrot.slane %v881, 2
  %v883 = vmax.f32 %v881, %v882
  %v884 = vrot.slane %v883, 1
  %v885 = vmax.f32 %v883, %v884
  %v886 = vsel %vm183, %v809, -inf
  %v887 = vrot.slane %v886, 4
  %v888 = vmax.f32 %v886, %v887
  %v889 = vrot.slane %v888, 2
  %v890 = vmax.f32 %v888, %v889
  %v891 = vrot.slane %v890, 1
  %v892 = vmax.f32 %v890, %v891
  %v893 = vsel %vm183, %v841, -inf
  %v894 = vrot.slane %v893, 4
  %v895 = vmax.f32 %v893, %v894
  %v896 = vrot.slane %v895, 2
  %v897 = vmax.f32 %v895, %v896
  %v898 = vrot.slane %v897, 1
  %v899 = vmax.f32 %v897, %v898
  %v900 = vsel %vm183, %v810, -inf
  %v901 = vrot.slane %v900, 4
  %v902 = vmax.f32 %v900, %v901
  %v903 = vrot.slane %v902, 2
  %v904 = vmax.f32 %v902, %v903
  %v905 = vrot.slane %v904, 1
  %v906 = vmax.f32 %v904, %v905
  %v907 = vsel %vm183, %v842, -inf
  %v908 = vrot.slane %v907, 4
  %v909 = vmax.f32 %v907, %v908
  %v910 = vrot.slane %v909, 2
  %v911 = vmax.f32 %v909, %v910
  %v912 = vrot.slane %v911, 1
  %v913 = vmax.f32 %v911, %v912
  %v914 = vsel %vm183, %v811, -inf
  %v915 = vrot.slane %v914, 4
  %v916 = vmax.f32 %v914, %v915
  %v917 = vrot.slane %v916, 2
  %v918 = vmax.f32 %v916, %v917
  %v919 = vrot.slane %v918, 1
  %v920 = vmax.f32 %v918, %v919
  %v921 = vsel %vm183, %v843, -inf
  %v922 = vrot.slane %v921, 4
  %v923 = vmax.f32 %v921, %v922
  %v924 = vrot.slane %v923, 2
  %v925 = vmax.f32 %v923, %v924
  %v926 = vrot.slane %v925, 1
  %v927 = vmax.f32 %v925, %v926
  %v928 = vsel %vm183, %v812, -inf
  %v929 = vrot.slane %v928, 4
  %v930 = vmax.f32 %v928, %v929
  %v931 = vrot.slane %v930, 2
  %v932 = vmax.f32 %v930, %v931
  %v933 = vrot.slane %v932, 1
  %v934 = vmax.f32 %v932, %v933
  %v935 = vsel %vm183, %v844, -inf
  %v936 = vrot.slane %v935, 4
  %v937 = vmax.f32 %v935, %v936
  %v938 = vrot.slane %v937, 2
  %v939 = vmax.f32 %v937, %v938
  %v940 = vrot.slane %v939, 1
  %v941 = vmax.f32 %v939, %v940
  %v942 = vsel %vm183, %v813, -inf
  %v943 = vrot.slane %v942, 4
  %v944 = vmax.f32 %v942, %v943
  %v945 = vrot.slane %v944, 2
  %v946 = vmax.f32 %v944, %v945
  %v947 = vrot.slane %v946, 1
  %v948 = vmax.f32 %v946, %v947
  %v949 = vsel %vm183, %v845, -inf
  %v950 = vrot.slane %v949, 4
  %v951 = vmax.f32 %v949, %v950
  %v952 = vrot.slane %v951, 2
  %v953 = vmax.f32 %v951, %v952
  %v954 = vrot.slane %v953, 1
  %v955 = vmax.f32 %v953, %v954
  %v956 = vsel %vm183, %v814, -inf
  %v957 = vrot.slane %v956, 4
  %v958 = vmax.f32 %v956, %v957
  %v959 = vrot.slane %v958, 2
  %v960 = vmax.f32 %v958, %v959
  %v961 = vrot.slane %v960, 1
  %v962 = vmax.f32 %v960, %v961
  %v963 = vsel %vm183, %v846, -inf
  %v964 = vrot.slane %v963, 4
  %v965 = vmax.f32 %v963, %v964
  %v966 = vrot.slane %v965, 2
  %v967 = vmax.f32 %v965, %v966
  %v968 = vrot.slane %v967, 1
  %v969 = vmax.f32 %v967, %v968
  %v970 = vsel %vm183, %v815, -inf
  %v971 = vrot.slane %v970, 4
  %v972 = vmax.f32 %v970, %v971
  %v973 = vrot.slane %v972, 2
  %v974 = vmax.f32 %v972, %v973
  %v975 = vrot.slane %v974, 1
  %v976 = vmax.f32 %v974, %v975
  %v977 = vsel %vm183, %v847, -inf
  %v978 = vrot.slane %v977, 4
  %v979 = vmax.f32 %v977, %v978
  %v980 = vrot.slane %v979, 2
  %v981 = vmax.f32 %v979, %v980
  %v982 = vrot.slane %v981, 1
  %v983 = vmax.f32 %v981, %v982
  %v984 = vsel %vm183, %v816, -inf
  %v985 = vrot.slane %v984, 4
  %v986 = vmax.f32 %v984, %v985
  %v987 = vrot.slane %v986, 2
  %v988 = vmax.f32 %v986, %v987
  %v989 = vrot.slane %v988, 1
  %v990 = vmax.f32 %v988, %v989
  %v991 = vsel %vm183, %v848, -inf
  %v992 = vrot.slane %v991, 4
  %v993 = vmax.f32 %v991, %v992
  %v994 = vrot.slane %v993, 2
  %v995 = vmax.f32 %v993, %v994
  %v996 = vrot.slane %v995, 1
  %v997 = vmax.f32 %v995, %v996
  %v998 = vsel %vm183, %v817, -inf
  %v999 = vrot.slane %v998, 4
  %v1000 = vmax.f32 %v998, %v999
  %v1001 = vrot.slane %v1000, 2
  %v1002 = vmax.f32 %v1000, %v1001
  %v1003 = vrot.slane %v1002, 1
  %v1004 = vmax.f32 %v1002, %v1003
  %v1005 = vsel %vm183, %v849, -inf
  %v1006 = vrot.slane %v1005, 4
  %v1007 = vmax.f32 %v1005, %v1006
  %v1008 = vrot.slane %v1007, 2
  %v1009 = vmax.f32 %v1007, %v1008
  %v1010 = vrot.slane %v1009, 1
  %v1011 = vmax.f32 %v1009, %v1010
  %v1012 = vsel %vm183, %v818, -inf
  %v1013 = vrot.slane %v1012, 4
  %v1014 = vmax.f32 %v1012, %v1013
  %v1015 = vrot.slane %v1014, 2
  %v1016 = vmax.f32 %v1014, %v1015
  %v1017 = vrot.slane %v1016, 1
  %v1018 = vmax.f32 %v1016, %v1017
  %v1019 = vsel %vm183, %v850, -inf
  %v1020 = vrot.slane %v1019, 4
  %v1021 = vmax.f32 %v1019, %v1020
  %v1022 = vrot.slane %v1021, 2
  %v1023 = vmax.f32 %v1021, %v1022
  %v1024 = vrot.slane %v1023, 1
  %v1025 = vmax.f32 %v1023, %v1024
  %v1026 = vsel %vm183, %v819, -inf
  %v1027 = vrot.slane %v1026, 4
  %v1028 = vmax.f32 %v1026, %v1027
  %v1029 = vrot.slane %v1028, 2
  %v1030 = vmax.f32 %v1028, %v1029
  %v1031 = vrot.slane %v1030, 1
  %v1032 = vmax.f32 %v1030, %v1031
  %v1033 = vsel %vm183, %v851, -inf
  %v1034 = vrot.slane %v1033, 4
  %v1035 = vmax.f32 %v1033, %v1034
  %v1036 = vrot.slane %v1035, 2
  %v1037 = vmax.f32 %v1035, %v1036
  %v1038 = vrot.slane %v1037, 1
  %v1039 = vmax.f32 %v1037, %v1038
  %v1040 = vsel %vm183, %v820, -inf
  %v1041 = vrot.slane %v1040, 4
  %v1042 = vmax.f32 %v1040, %v1041
  %v1043 = vrot.slane %v1042, 2
  %v1044 = vmax.f32 %v1042, %v1043
  %v1045 = vrot.slane %v1044, 1
  %v1046 = vmax.f32 %v1044, %v1045
  %v1047 = vsel %vm183, %v852, -inf
  %v1048 = vrot.slane %v1047, 4
  %v1049 = vmax.f32 %v1047, %v1048
  %v1050 = vrot.slane %v1049, 2
  %v1051 = vmax.f32 %v1049, %v1050
  %v1052 = vrot.slane %v1051, 1
  %v1053 = vmax.f32 %v1051, %v1052
  %v1054 = vsel %vm183, %v821, -inf
  %v1055 = vrot.slane %v1054, 4
  %v1056 = vmax.f32 %v1054, %v1055
  %v1057 = vrot.slane %v1056, 2
  %v1058 = vmax.f32 %v1056, %v1057
  %v1059 = vrot.slane %v1058, 1
  %v1060 = vmax.f32 %v1058, %v1059
  %v1061 = vsel %vm183, %v853, -inf
  %v1062 = vrot.slane %v1061, 4
  %v1063 = vmax.f32 %v1061, %v1062
  %v1064 = vrot.slane %v1063, 2
  %v1065 = vmax.f32 %v1063, %v1064
  %v1066 = vrot.slane %v1065, 1
  %v1067 = vmax.f32 %v1065, %v1066
  %v1068 = vsel %vm183, %v822, -inf
  %v1069 = vrot.slane %v1068, 4
  %v1070 = vmax.f32 %v1068, %v1069
  %v1071 = vrot.slane %v1070, 2
  %v1072 = vmax.f32 %v1070, %v1071
  %v1073 = vrot.slane %v1072, 1
  %v1074 = vmax.f32 %v1072, %v1073
  %v1075 = vsel %vm183, %v854, -inf
  %v1076 = vrot.slane %v1075, 4
  %v1077 = vmax.f32 %v1075, %v1076
  %v1078 = vrot.slane %v1077, 2
  %v1079 = vmax.f32 %v1077, %v1078
  %v1080 = vrot.slane %v1079, 1
  %v1081 = vmax.f32 %v1079, %v1080
  %v1082 = vsel %vm183, %v823, -inf
  %v1083 = vrot.slane %v1082, 4
  %v1084 = vmax.f32 %v1082, %v1083
  %v1085 = vrot.slane %v1084, 2
  %v1086 = vmax.f32 %v1084, %v1085
  %v1087 = vrot.slane %v1086, 1
  %v1088 = vmax.f32 %v1086, %v1087
  %v1089 = vsel %vm183, %v855, -inf
  %v1090 = vrot.slane %v1089, 4
  %v1091 = vmax.f32 %v1089, %v1090
  %v1092 = vrot.slane %v1091, 2
  %v1093 = vmax.f32 %v1091, %v1092
  %v1094 = vrot.slane %v1093, 1
  %v1095 = vmax.f32 %v1093, %v1094
  %vm1128 = vcmask 1041409
  %v1129 = vsel %vm1128, %v885, %v878
  %vm1130 = vcmask 1042434
  %v1131 = vsel %vm1130, %v892, %v1129
  %vm1132 = vcmask 1043459
  %v1133 = vsel %vm1132, %v899, %v1131
  %vm1134 = vcmask 1044484
  %v1135 = vsel %vm1134, %v906, %v1133
  %vm1136 = vcmask 1045509
  %v1137 = vsel %vm1136, %v913, %v1135
  %vm1138 = vcmask 1046534
  %v1139 = vsel %vm1138, %v920, %v1137
  %vm1140 = vcmask 1047559
  %v1141 = vsel %vm1140, %v927, %v1139
  %v1142 = vsel %vm1128, %v941, %v934
  %v1143 = vsel %vm1130, %v948, %v1142
  %v1144 = vsel %vm1132, %v955, %v1143
  %v1145 = vsel %vm1134, %v962, %v1144
  %v1146 = vsel %vm1136, %v969, %v1145
  %v1147 = vsel %vm1138, %v976, %v1146
  %v1148 = vsel %vm1140, %v983, %v1147
  %v1149 = vsel %vm1128, %v997, %v990
  %v1150 = vsel %vm1130, %v1004, %v1149
  %v1151 = vsel %vm1132, %v1011, %v1150
  %v1152 = vsel %vm1134, %v1018, %v1151
  %v1153 = vsel %vm1136, %v1025, %v1152
  %v1154 = vsel %vm1138, %v1032, %v1153
  %v1155 = vsel %vm1140, %v1039, %v1154
  %v1156 = vsel %vm1128, %v1053, %v1046
  %v1157 = vsel %vm1130, %v1060, %v1156
  %v1158 = vsel %vm1132, %v1067, %v1157
  %v1159 = vsel %vm1134, %v1074, %v1158
  %v1160 = vsel %vm1136, %v1081, %v1159
  %v1161 = vsel %vm1138, %v1088, %v1160
  %v1162 = vsel %vm1140, %v1095, %v1161
  %v1168 = vunpack.c.l.s4 1935823168
  %v1169 = vunpack.c.0.s8 %v1168
  %v1170 = vperm.slane %v1141, %v1169
  %v1172 = vunpack.c.l.s4 1935823168
  %v1173 = vunpack.c.0.s8 %v1172
  %v1174 = vperm.slane %v1148, %v1173
  %v1176 = vunpack.c.l.s4 1935823168
  %v1177 = vunpack.c.0.s8 %v1176
  %v1178 = vperm.slane %v1155, %v1177
  %v1180 = vunpack.c.l.s4 1935823168
  %v1181 = vunpack.c.0.s8 %v1180
  %v1182 = vperm.slane %v1162, %v1181
  %1187 = vst [vmem:[#allocation1] ss:$4 sm:$0xff] %v1170
  %s1188 = scalar_lea.vmem [#allocation1], 1
  %1189 = vst [vmem:[%s1188] ss:$4 sm:$0xff] %v1174
  %s1190 = scalar_lea.vmem [#allocation1], 2
  %1191 = vst [vmem:[%s1190] ss:$4 sm:$0xff] %v1178
  %s1192 = scalar_lea.vmem [#allocation1], 3
  %1193 = vst [vmem:[%s1192] ss:$4 sm:$0xff] %v1182
  %v1194 = vld.sshfl [vmem:[#allocation1] sm:$0xff pattern:$0x73625140]
  %v1195 = vld.sshfl [vmem:[#allocation1 + $0x8] sm:$0xff pattern:$0x73625140]
  %v1196 = vld.sshfl [vmem:[#allocation1 + $0x10] sm:$0xff pattern:$0x73625140]
  %v1197 = vld.sshfl [vmem:[#allocation1 + $0x18] sm:$0xff pattern:$0x73625140]
  %v1202 = vpack.c.bf16 %v1194, %v1194
  %v1203 = vpack.c.bf16 %v1195, %v1195
  %v1204 = vpack.c.bf16 %v1196, %v1196
  %v1205 = vpack.c.bf16 %v1197, %v1197
  %v1206 = vld [vmem:[%s2] sm:$0xf]
  %v1207 = vld [vmem:[%s2 + $0x4] sm:$0xf]
  %v1208 = vld [vmem:[%s2 + $0x8] sm:$0xf]
  %v1209 = vld [vmem:[%s2 + $0xc] sm:$0xf]
  %v1210 = vld [vmem:[%s2 + $0x10] sm:$0xf]
  %v1211 = vld [vmem:[%s2 + $0x14] sm:$0xf]
  %v1212 = vld [vmem:[%s2 + $0x18] sm:$0xf]
  %v1213 = vld [vmem:[%s2 + $0x1c] sm:$0xf]
  %v1214 = vld [vmem:[%s2 + $0x20] sm:$0xf]
  %v1215 = vld [vmem:[%s2 + $0x24] sm:$0xf]
  %v1216 = vld [vmem:[%s2 + $0x28] sm:$0xf]
  %v1217 = vld [vmem:[%s2 + $0x2c] sm:$0xf]
  %v1218 = vld [vmem:[%s2 + $0x30] sm:$0xf]
  %v1219 = vld [vmem:[%s2 + $0x34] sm:$0xf]
  %v1220 = vld [vmem:[%s2 + $0x38] sm:$0xf]
  %v1221 = vld [vmem:[%s2 + $0x3c] sm:$0xf]
  %v1222 = vld [vmem:[%s2 + $0x40] sm:$0xf]
  %v1223 = vld [vmem:[%s2 + $0x44] sm:$0xf]
  %v1224 = vld [vmem:[%s2 + $0x48] sm:$0xf]
  %v1225 = vld [vmem:[%s2 + $0x4c] sm:$0xf]
  %v1226 = vld [vmem:[%s2 + $0x50] sm:$0xf]
  %v1227 = vld [vmem:[%s2 + $0x54] sm:$0xf]
  %v1228 = vld [vmem:[%s2 + $0x58] sm:$0xf]
  %v1229 = vld [vmem:[%s2 + $0x5c] sm:$0xf]
  %v1230 = vld [vmem:[%s2 + $0x60] sm:$0xf]
  %v1231 = vld [vmem:[%s2 + $0x64] sm:$0xf]
  %v1232 = vld [vmem:[%s2 + $0x68] sm:$0xf]
  %v1233 = vld [vmem:[%s2 + $0x6c] sm:$0xf]
  %v1234 = vld [vmem:[%s2 + $0x70] sm:$0xf]
  %v1235 = vld [vmem:[%s2 + $0x74] sm:$0xf]
  %v1236 = vld [vmem:[%s2 + $0x78] sm:$0xf]
  %v1237 = vld [vmem:[%s2 + $0x7c] sm:$0xf]
  %v1238 = vld [vmem:[%s2 + $0x80] sm:$0xf]
  %v1239 = vld [vmem:[%s2 + $0x84] sm:$0xf]
  %v1240 = vld [vmem:[%s2 + $0x88] sm:$0xf]
  %v1241 = vld [vmem:[%s2 + $0x8c] sm:$0xf]
  %v1242 = vld [vmem:[%s2 + $0x90] sm:$0xf]
  %v1243 = vld [vmem:[%s2 + $0x94] sm:$0xf]
  %v1244 = vld [vmem:[%s2 + $0x98] sm:$0xf]
  %v1245 = vld [vmem:[%s2 + $0x9c] sm:$0xf]
  %v1246 = vld [vmem:[%s2 + $0xa0] sm:$0xf]
  %v1247 = vld [vmem:[%s2 + $0xa4] sm:$0xf]
  %v1248 = vld [vmem:[%s2 + $0xa8] sm:$0xf]
  %v1249 = vld [vmem:[%s2 + $0xac] sm:$0xf]
  %v1250 = vld [vmem:[%s2 + $0xb0] sm:$0xf]
  %v1251 = vld [vmem:[%s2 + $0xb4] sm:$0xf]
  %v1252 = vld [vmem:[%s2 + $0xb8] sm:$0xf]
  %v1253 = vld [vmem:[%s2 + $0xbc] sm:$0xf]
  %v1254 = vld [vmem:[%s2 + $0xc0] sm:$0xf]
  %v1255 = vld [vmem:[%s2 + $0xc4] sm:$0xf]
  %v1256 = vld [vmem:[%s2 + $0xc8] sm:$0xf]
  %v1257 = vld [vmem:[%s2 + $0xcc] sm:$0xf]
  %v1258 = vld [vmem:[%s2 + $0xd0] sm:$0xf]
  %v1259 = vld [vmem:[%s2 + $0xd4] sm:$0xf]
  %v1260 = vld [vmem:[%s2 + $0xd8] sm:$0xf]
  %v1261 = vld [vmem:[%s2 + $0xdc] sm:$0xf]
  %v1262 = vld [vmem:[%s2 + $0xe0] sm:$0xf]
  %v1263 = vld [vmem:[%s2 + $0xe4] sm:$0xf]
  %v1264 = vld [vmem:[%s2 + $0xe8] sm:$0xf]
  %v1265 = vld [vmem:[%s2 + $0xec] sm:$0xf]
  %v1266 = vld [vmem:[%s2 + $0xf0] sm:$0xf]
  %v1267 = vld [vmem:[%s2 + $0xf4] sm:$0xf]
  %v1268 = vld [vmem:[%s2 + $0xf8] sm:$0xf]
  %v1269 = vld [vmem:[%s2 + $0xfc] sm:$0xf]
  %v1270 = vld [vmem:[%s3] sm:$0x1]
  %v1272 = vperm.slane %v1270, 0
  %v1338 = vunpack.c.l.b16 %v1206
  %v1339 = vunpack.c.l.b16 %v1207
  %v1340 = vunpack.c.l.b16 %v1208
  %v1341 = vunpack.c.l.b16 %v1209
  %v1342 = vunpack.c.l.b16 %v1210
  %v1343 = vunpack.c.l.b16 %v1211
  %v1344 = vunpack.c.l.b16 %v1212
  %v1345 = vunpack.c.l.b16 %v1213
  %v1346 = vunpack.c.l.b16 %v1214
  %v1347 = vunpack.c.l.b16 %v1215
  %v1348 = vunpack.c.l.b16 %v1216
  %v1349 = vunpack.c.l.b16 %v1217
  %v1350 = vunpack.c.l.b16 %v1218
  %v1351 = vunpack.c.l.b16 %v1219
  %v1352 = vunpack.c.l.b16 %v1220
  %v1353 = vunpack.c.l.b16 %v1221
  %v1354 = vunpack.c.l.b16 %v1222
  %v1355 = vunpack.c.l.b16 %v1223
  %v1356 = vunpack.c.l.b16 %v1224
  %v1357 = vunpack.c.l.b16 %v1225
  %v1358 = vunpack.c.l.b16 %v1226
  %v1359 = vunpack.c.l.b16 %v1227
  %v1360 = vunpack.c.l.b16 %v1228
  %v1361 = vunpack.c.l.b16 %v1229
  %v1362 = vunpack.c.l.b16 %v1230
  %v1363 = vunpack.c.l.b16 %v1231
  %v1364 = vunpack.c.l.b16 %v1232
  %v1365 = vunpack.c.l.b16 %v1233
  %v1366 = vunpack.c.l.b16 %v1234
  %v1367 = vunpack.c.l.b16 %v1235
  %v1368 = vunpack.c.l.b16 %v1236
  %v1369 = vunpack.c.l.b16 %v1237
  %v1370 = vunpack.c.l.b16 %v1238
  %v1371 = vunpack.c.l.b16 %v1239
  %v1372 = vunpack.c.l.b16 %v1240
  %v1373 = vunpack.c.l.b16 %v1241
  %v1374 = vunpack.c.l.b16 %v1242
  %v1375 = vunpack.c.l.b16 %v1243
  %v1376 = vunpack.c.l.b16 %v1244
  %v1377 = vunpack.c.l.b16 %v1245
  %v1378 = vunpack.c.l.b16 %v1246
  %v1379 = vunpack.c.l.b16 %v1247
  %v1380 = vunpack.c.l.b16 %v1248
  %v1381 = vunpack.c.l.b16 %v1249
  %v1382 = vunpack.c.l.b16 %v1250
  %v1383 = vunpack.c.l.b16 %v1251
  %v1384 = vunpack.c.l.b16 %v1252
  %v1385 = vunpack.c.l.b16 %v1253
  %v1386 = vunpack.c.l.b16 %v1254
  %v1387 = vunpack.c.l.b16 %v1255
  %v1388 = vunpack.c.l.b16 %v1256
  %v1389 = vunpack.c.l.b16 %v1257
  %v1390 = vunpack.c.l.b16 %v1258
  %v1391 = vunpack.c.l.b16 %v1259
  %v1392 = vunpack.c.l.b16 %v1260
  %v1393 = vunpack.c.l.b16 %v1261
  %v1394 = vunpack.c.l.b16 %v1262
  %v1395 = vunpack.c.l.b16 %v1263
  %v1396 = vunpack.c.l.b16 %v1264
  %v1397 = vunpack.c.l.b16 %v1265
  %v1398 = vunpack.c.l.b16 %v1266
  %v1399 = vunpack.c.l.b16 %v1267
  %v1400 = vunpack.c.l.b16 %v1268
  %v1401 = vunpack.c.l.b16 %v1269
  %v1402 = vpack.c.b16 %v1339, %v1338
  %v1403 = vpack.c.b16 %v1341, %v1340
  %v1404 = vpack.c.b16 %v1343, %v1342
  %v1405 = vpack.c.b16 %v1345, %v1344
  %v1406 = vpack.c.b16 %v1347, %v1346
  %v1407 = vpack.c.b16 %v1349, %v1348
  %v1408 = vpack.c.b16 %v1351, %v1350
  %v1409 = vpack.c.b16 %v1353, %v1352
  %v1410 = vpack.c.b16 %v1355, %v1354
  %v1411 = vpack.c.b16 %v1357, %v1356
  %v1412 = vpack.c.b16 %v1359, %v1358
  %v1413 = vpack.c.b16 %v1361, %v1360
  %v1414 = vpack.c.b16 %v1363, %v1362
  %v1415 = vpack.c.b16 %v1365, %v1364
  %v1416 = vpack.c.b16 %v1367, %v1366
  %v1417 = vpack.c.b16 %v1369, %v1368
  %v1418 = vpack.c.b16 %v1371, %v1370
  %v1419 = vpack.c.b16 %v1373, %v1372
  %v1420 = vpack.c.b16 %v1375, %v1374
  %v1421 = vpack.c.b16 %v1377, %v1376
  %v1422 = vpack.c.b16 %v1379, %v1378
  %v1423 = vpack.c.b16 %v1381, %v1380
  %v1424 = vpack.c.b16 %v1383, %v1382
  %v1425 = vpack.c.b16 %v1385, %v1384
  %v1426 = vpack.c.b16 %v1387, %v1386
  %v1427 = vpack.c.b16 %v1389, %v1388
  %v1428 = vpack.c.b16 %v1391, %v1390
  %v1429 = vpack.c.b16 %v1393, %v1392
  %v1430 = vpack.c.b16 %v1395, %v1394
  %v1431 = vpack.c.b16 %v1397, %v1396
  %v1432 = vpack.c.b16 %v1399, %v1398
  %v1433 = vpack.c.b16 %v1401, %v1400
  %1466 = vmatpush.bf16.msra.mxu0 %v1409
  %1467 = vmatpush.bf16.msra.mxu0 %v1408
  %1468 = vmatpush.bf16.msra.mxu0 %v1407
  %1469 = vmatpush.bf16.msra.mxu0 %v1406
  %1470 = vmatpush.bf16.msra.mxu0 %v1405
  %1471 = vmatpush.bf16.msra.mxu0 %v1404
  %1472 = vmatpush.bf16.msra.mxu0 %v1403
  %1473 = vmatpush.bf16.msra.mxu0 %v1402
  %1474 = vmatmul.bf16.gmra.mxu0 %v1202
  %v1475 = vpop.f32.mrf.mxu0
  %v1476 = vadd.f32 %v1272, %v1475
  %v1477 = vpop.f32.mrf.mxu0
  %1478 = vdwg.mxu0
  %1479 = vmatpush.bf16.msra.mxu0 %v1417
  %1480 = vmatpush.bf16.msra.mxu0 %v1416
  %1481 = vmatpush.bf16.msra.mxu0 %v1415
  %1482 = vmatpush.bf16.msra.mxu0 %v1414
  %1483 = vmatpush.bf16.msra.mxu0 %v1413
  %1484 = vmatpush.bf16.msra.mxu0 %v1412
  %1485 = vmatpush.bf16.msra.mxu0 %v1411
  %1486 = vmatpush.bf16.msra.mxu0 %v1410
  %1487 = vmatmul.bf16.gmra.mxu0 %v1203
  %v1488 = vpop.f32.mrf.mxu0
  %v1489 = vadd.f32 %v1476, %v1488
  %v1490 = vpop.f32.mrf.mxu0
  %1491 = vdwg.mxu0
  %1492 = vmatpush.bf16.msra.mxu0 %v1425
  %1493 = vmatpush.bf16.msra.mxu0 %v1424
  %1494 = vmatpush.bf16.msra.mxu0 %v1423
  %1495 = vmatpush.bf16.msra.mxu0 %v1422
  %1496 = vmatpush.bf16.msra.mxu0 %v1421
  %1497 = vmatpush.bf16.msra.mxu0 %v1420
  %1498 = vmatpush.bf16.msra.mxu0 %v1419
  %1499 = vmatpush.bf16.msra.mxu0 %v1418
  %1500 = vmatmul.bf16.gmra.mxu0 %v1204
  %v1501 = vpop.f32.mrf.mxu0
  %v1502 = vadd.f32 %v1489, %v1501
  %v1503 = vpop.f32.mrf.mxu0
  %1504 = vdwg.mxu0
  %1505 = vmatpush.bf16.msra.mxu0 %v1433
  %1506 = vmatpush.bf16.msra.mxu0 %v1432
  %1507 = vmatpush.bf16.msra.mxu0 %v1431
  %1508 = vmatpush.bf16.msra.mxu0 %v1430
  %1509 = vmatpush.bf16.msra.mxu0 %v1429
  %1510 = vmatpush.bf16.msra.mxu0 %v1428
  %1511 = vmatpush.bf16.msra.mxu0 %v1427
  %1512 = vmatpush.bf16.msra.mxu0 %v1426
  %1513 = vmatmul.bf16.gmra.mxu0 %v1205
  %v1514 = vpop.f32.mrf.mxu0
  %v1515 = vadd.f32 %v1502, %v1514
  %v1516 = vpop.f32.mrf.mxu0
  %1517 = vdwg.mxu0
  %1518 = vst [vmem:[%s4] sm:$0xff] %v1515
  // Predicated region
  $region18: #{_lambda_.1} parent=0 // pred_check
    _
  $region19: #{_lambda_.1} parent=0 // pred_check_branch
    %1520 = sbr.rel (0) target = $region21
  $region20: #{_lambda_.1} parent=0 // pred_region
    _
  $region21: #{_lambda_.1} parent=0 // pred_fallthru
    _
  // Predicated region
  $region22: #{_lambda_.1} parent=0 // pred_check
    _
  $region23: #{_lambda_.1} parent=0 // pred_check_branch
    %1522 = sbr.rel (0) target = $region25
  $region24: #{_lambda_.1} parent=0 // pred_region
    _
  $region25: #{_lambda_.1} parent=0 // pred_fallthru
    _

</llo_original>
